<compile_context>
chip_gen: v7x
topology: tpu7x:2x2x1
jax: 0.10.0
libtpu: 0.0.40
codegen_flags: <defaults>
</compile_context>

<pallas_src>
import functools

import jax
import jax.numpy as jnp
from jax.experimental import pallas as pl
from jax.experimental.pallas import tpu as pltpu

EPS = 1e-5
LANE = 128


def _round_up(x, m):
    return (x + m - 1) // m * m


def _vmem_budgets():
    """(per-block byte budget, vmem_limit cap) sized per TPU generation."""
    kind = ""
    try:
        kind = jax.devices()[0].device_kind.lower()
    except Exception:
        pass
    if "v2" in kind or "v3" in kind:
        return 1 << 20, 12 << 20
    if any(t in kind for t in ("v4", "v5", "v6")):      # 128 MiB VMEM chips
        return 12 << 20, 96 << 20
    # v7x (64 MiB physical / 32 MiB scoped default) and unknown: conservative.
    return 4 << 20, 40 << 20


def _pick_c_tile(channels, gran, per_channel_bytes, block_budget):
    """Channel tile: multiple of the dtype sublane granularity, sized to keep
    one input block under the budget while targeting ~4 grid steps."""
    c_gran = _round_up(channels, gran)
    max_c = max(gran, (block_budget // max(per_channel_bytes, 1)) // gran * gran)
    target = max(gran, _round_up((c_gran + 3) // 4, gran))
    return int(min(max_c, target))


def vn_batchnorm_kernel(x_ref, gamma_ref, beta_ref, o_ref, *,
                        n_pad, n_real, c_tile, count):
    # x_ref / o_ref: [B, C_TILE, 3*N_pad] lane-dense, 128-aligned blocks.
    # gamma_ref / beta_ref: whole [C_pad, 1] resident in VMEM (fetched once).
    f32 = jnp.float32

    # Squared vector norm over xyz: three lane-aligned slices, pure VPU.
    sq = None
    for k in range(3):
        xk = x_ref[:, :, k * n_pad:(k + 1) * n_pad].astype(f32)   # [B, Ct, Np]
        sq = xk * xk if sq is None else sq + xk * xk

    # Exact sqrt for the statistics: zero-norm vectors give norm = 0 (same as
    # torch.sqrt), keeping the channel's mean/var finite. rsqrt is used only
    # for the final per-element scale, so its inf at zero-norm reproduces
    # PyTorch's pathological 0/0 -> NaN on those elements only.
    norm = jnp.sqrt(sq)                                            # [B, Ct, Np]
    inv_norm = jax.lax.rsqrt(sq)                                   # 1 / ||x||

    # Per-channel batch statistics over (B, N). Padded lanes contribute 0 to
    # the sums; the true count and a lane mask on the centered pass keep the
    # mean/variance unbiased (two-pass centered variance: no cancellation).
    inv_cnt = 1.0 / count
    s1 = jnp.sum(norm, axis=(0, 2), keepdims=True)                 # [1, Ct, 1]
    mean = s1 * inv_cnt
    centered = norm - mean
    if n_pad != n_real:
        lane = jax.lax.broadcasted_iota(jnp.int32, (1, 1, n_pad), 2)
        centered = centered * (lane < n_real).astype(f32)
    var = jnp.sum(centered * centered, axis=(0, 2), keepdims=True) * inv_cnt
    inv_std = jax.lax.rsqrt(var + EPS)                             # [1, Ct, 1]

    # Fused per-channel affine: norm_bn = a*norm + b.
    c0 = pl.multiple_of(pl.program_id(0) * c_tile, c_tile)
    gamma = gamma_ref[pl.ds(c0, c_tile), :][None]                  # [1, Ct, 1]
    beta = beta_ref[pl.ds(c0, c_tile), :][None]
    a = gamma * inv_std
    b = beta - mean * a

    # out = x * (norm_bn / norm) = x * (a + b / norm); broadcast over xyz.
    scale = a + b * inv_norm                                       # [B, Ct, Np]
    for k in range(3):
        xk = x_ref[:, :, k * n_pad:(k + 1) * n_pad].astype(f32)
        o_ref[:, :, k * n_pad:(k + 1) * n_pad] = (xk * scale).astype(o_ref.dtype)


def vn_batch_norm(x, gamma, beta):
    """x: [B, C, 3] (dim=3), [B, C, 3, N] (dim=4) or [B, C, 3, H, W] (dim=5)."""
    orig_shape = x.shape
    assert orig_shape[2] == 3, "expected xyz axis of size 3 at dim 2"
    B, C = int(orig_shape[0]), int(orig_shape[1])
    n = 1
    for d in orig_shape[3:]:
        n *= int(d)

    itemsize = jnp.dtype(x.dtype).itemsize
    gran = {4: 8, 2: 16, 1: 32}.get(itemsize, 8)        # sublane granularity
    n_pad = _round_up(n, LANE)                          # lane-aligned spatial
    three_np = 3 * n_pad

    block_budget, vmem_cap = _vmem_budgets()
    per_channel_bytes = B * three_np * itemsize
    c_tile = _pick_c_tile(C, gran, per_channel_bytes, block_budget)

    # At least 2 grid steps so the "parallel" channel axis both pipelines its
    # DMAs and shards across v7x's two TensorCores (never grid=(1,)).
    steps = max(2, -(-_round_up(C, gran) // c_tile))
    c_pad = steps * c_tile

    # Padded-size VMEM accounting: double-buffered in+out blocks, ~2 f32-block
    # equivalents of elementwise temps, lane-padded gamma/beta, headroom.
    blk = B * c_tile * three_np * itemsize
    f32_work = 2 * B * c_tile * three_np * 4
    params_bytes = 2 * 2 * c_pad * LANE * 4
    vmem_need = 4 * blk + f32_work + params_bytes + (2 << 20)
    if vmem_need > vmem_cap:
        # TODO(synk): two-pass tiled structure (stats sweep + normalize sweep
        #             over B/N tiles) for very large B*N per channel.
        raise ValueError(
            f"VNBatchNorm block does not fit VMEM (need ~{vmem_need >> 20} MiB,"
            f" cap {vmem_cap >> 20} MiB): B*N per channel is too large for the"
            " single-slab kernel.")
    vmem_limit = int(min(vmem_cap, max(8 << 20, vmem_need)))

    # Lane-dense padded layout [B, C_pad, 3*N_pad]; the (3, N_pad) -> 3*N_pad
    # collapse is free (contiguous), only the zero padding itself copies.
    x4 = x.reshape(B, C, 3, n)
    pad_c, pad_n = c_pad - C, n_pad - n
    if pad_c or pad_n:
        x4 = jnp.pad(x4, ((0, 0), (0, pad_c), (0, 0), (0, pad_n)))
    x3 = x4.reshape(B, c_pad, three_np)
    g = jnp.pad(gamma.astype(jnp.float32).reshape(C), (0, pad_c),
                constant_values=1.0).reshape(c_pad, 1)
    bt = jnp.pad(beta.astype(jnp.float32).reshape(C), (0, pad_c),
                 constant_values=0.0).reshape(c_pad, 1)

    out = pl.pallas_call(
        functools.partial(vn_batchnorm_kernel, n_pad=n_pad, n_real=n,
                          c_tile=c_tile, count=B * n),
        out_shape=jax.ShapeDtypeStruct((B, c_pad, three_np), x.dtype),
        grid=(steps,),
        in_specs=[
            pl.BlockSpec((B, c_tile, three_np), lambda c: (0, c, 0)),
            # gamma/beta: constant block index -> fetched once, stays resident.
            pl.BlockSpec((c_pad, 1), lambda c: (0, 0)),
            pl.BlockSpec((c_pad, 1), lambda c: (0, 0)),
        ],
        out_specs=pl.BlockSpec((B, c_tile, three_np), lambda c: (0, c, 0)),
        compiler_params=pltpu.CompilerParams(
            dimension_semantics=("parallel",),
            vmem_limit_bytes=vmem_limit,
        ),
    )(x3, g, bt)

    out = out.reshape(B, c_pad, 3, n_pad)[:, :C, :, :n]
    return out.reshape(orig_shape)


def _reference(x, gamma, beta):
    """Pure-JAX reference matching the PyTorch module (training-mode BN)."""
    norm = jnp.sqrt(jnp.sum(x * x, axis=2))                 # [B, C, N...]
    red = (0,) + tuple(range(2, norm.ndim))
    mean = jnp.mean(norm, axis=red, keepdims=True)
    var = jnp.mean((norm - mean) ** 2, axis=red, keepdims=True)
    gshape = (1, norm.shape[1]) + (1,) * (norm.ndim - 2)
    norm_bn = (norm - mean) / jnp.sqrt(var + EPS) * gamma.reshape(gshape) \
        + beta.reshape(gshape)
    return x / norm[:, :, None] * norm_bn[:, :, None]


if __name__ == "__main__":
    key = jax.random.PRNGKey(0)
    kx3, kx4, kx5, kg, kb = jax.random.split(key, 5)

    B, C, N = 2, 4, 16
    # non-trivial affine params (deterministic) to exercise the gamma/beta path
    gamma = 1.0 + 0.1 * jax.random.normal(kg, (C,), dtype=jnp.float32)
    beta = 0.1 * jax.random.normal(kb, (C,), dtype=jnp.float32)

    # dim == 4 case: x [B, C, 3, N]
    x4 = jax.random.normal(kx4, (B, C, 3, N), dtype=jnp.float32)
    out4 = jax.block_until_ready(vn_batch_norm(x4, gamma, beta))
    ref4 = _reference(x4, gamma, beta)
    assert out4.shape == x4.shape and out4.dtype == x4.dtype
    assert jnp.allclose(out4, ref4, atol=1e-4, rtol=1e-4), "dim=4 mismatch"

    # dim == 5 case: x [B, C, 3, H, W]
    H = W = 4
    x5 = jax.random.normal(kx5, (B, C, 3, H, W), dtype=jnp.float32)
    out5 = jax.block_until_ready(vn_batch_norm(x5, gamma, beta))
    ref5 = _reference(x5, gamma, beta)
    assert out5.shape == x5.shape and out5.dtype == x5.dtype
    assert jnp.allclose(out5, ref5, atol=1e-4, rtol=1e-4), "dim=5 mismatch"

    # dim == 3 case: x [B, C, 3]
    x3 = jax.random.normal(kx3, (B, C, 3), dtype=jnp.float32)
    out3 = jax.block_until_ready(vn_batch_norm(x3, gamma, beta))
    ref3 = _reference(x3, gamma, beta)
    assert out3.shape == x3.shape and out3.dtype == x3.dtype
    assert jnp.allclose(out3, ref3, atol=1e-4, rtol=1e-4), "dim=3 mismatch"

    print("KERNEL_OK")
</pallas_src>

<mosaic_0001>
module attributes {stable_mosaic.version = 11 : i64} {
  func.func @vn_batchnorm_kernel(%arg0: i32, %arg1: memref<2x8x384xf32, #tpu.memory_space<vmem>>, %arg2: memref<16x1xf32, #tpu.memory_space<vmem>>, %arg3: memref<16x1xf32, #tpu.memory_space<vmem>>, %arg4: memref<2x8x384xf32, #tpu.memory_space<vmem>>) attributes {dimension_semantics = [#tpu.dimension_semantics<parallel>], iteration_bounds = array<i64: 2>, scalar_prefetch = 0 : i64, scratch_operands = 0 : i64, tpu.core_type = #tpu.core_type<tc>, window_params = [{transform_indices = @transform_0, window_bounds = array<i64: 2, 8, 384>}, {pipeline_mode = #tpu.pipeline_mode<synchronous>, transform_indices = @transform_1, window_bounds = array<i64: 16, 1>}, {pipeline_mode = #tpu.pipeline_mode<synchronous>, transform_indices = @transform_2, window_bounds = array<i64: 16, 1>}, {transform_indices = @transform_3, window_bounds = array<i64: 2, 8, 384>}]} {
    %c0 = arith.constant 0 : index
    %c0_0 = arith.constant 0 : index
    %c0_1 = arith.constant 0 : index
    %0 = vector.load %arg1[%c0, %c0_0, %c0_1] : memref<2x8x384xf32, #tpu.memory_space<vmem>>, vector<2x8x128xf32>
    %1 = arith.mulf %0, %0 : vector<2x8x128xf32>
    %c0_2 = arith.constant 0 : index
    %c0_3 = arith.constant 0 : index
    %c128 = arith.constant 128 : index
    %2 = vector.load %arg1[%c0_2, %c0_3, %c128] : memref<2x8x384xf32, #tpu.memory_space<vmem>>, vector<2x8x128xf32>
    %3 = arith.mulf %2, %2 : vector<2x8x128xf32>
    %4 = arith.addf %1, %3 : vector<2x8x128xf32>
    %c0_4 = arith.constant 0 : index
    %c0_5 = arith.constant 0 : index
    %c256 = arith.constant 256 : index
    %5 = vector.load %arg1[%c0_4, %c0_5, %c256] : memref<2x8x384xf32, #tpu.memory_space<vmem>>, vector<2x8x128xf32>
    %6 = arith.mulf %5, %5 : vector<2x8x128xf32>
    %7 = arith.addf %4, %6 : vector<2x8x128xf32>
    %8 = math.sqrt %7 : vector<2x8x128xf32>
    %9 = math.rsqrt %7 : vector<2x8x128xf32>
    %cst = arith.constant dense<0.000000e+00> : vector<8xf32>
    %10 = vector.multi_reduction <add>, %8, %cst [0, 2] : vector<2x8x128xf32> to vector<8xf32>
    %11 = vector.shape_cast %10 : vector<8xf32> to vector<1x8x1xf32>
    %cst_6 = arith.constant 3.125000e-02 : f32
    %12 = vector.broadcast %cst_6 : f32 to vector<1x8x1xf32>
    %13 = arith.mulf %11, %12 : vector<1x8x1xf32>
    %14 = vector.broadcast %13 : vector<1x8x1xf32> to vector<2x8x128xf32>
    %15 = arith.subf %8, %14 : vector<2x8x128xf32>
    %16 = tpu.iota {dimensions = array<i32: 2>} : vector<1x1x128xi32>
    %c16_i32 = arith.constant 16 : i32
    %17 = vector.broadcast %c16_i32 : i32 to vector<1x1x128xi32>
    %18 = arith.cmpi slt, %16, %17 : vector<1x1x128xi32>
    %19 = arith.extui %18 : vector<1x1x128xi1> to vector<1x1x128xi32>
    %20 = arith.sitofp %19 : vector<1x1x128xi32> to vector<1x1x128xf32>
    %21 = vector.broadcast %20 : vector<1x1x128xf32> to vector<2x8x128xf32>
    %22 = arith.mulf %15, %21 : vector<2x8x128xf32>
    %23 = arith.mulf %22, %22 : vector<2x8x128xf32>
    %cst_7 = arith.constant dense<0.000000e+00> : vector<8xf32>
    %24 = vector.multi_reduction <add>, %23, %cst_7 [0, 2] : vector<2x8x128xf32> to vector<8xf32>
    %25 = vector.shape_cast %24 : vector<8xf32> to vector<1x8x1xf32>
    %cst_8 = arith.constant 3.125000e-02 : f32
    %26 = vector.broadcast %cst_8 : f32 to vector<1x8x1xf32>
    %27 = arith.mulf %25, %26 : vector<1x8x1xf32>
    %cst_9 = arith.constant 9.99999974E-6 : f32
    %28 = vector.broadcast %cst_9 : f32 to vector<1x8x1xf32>
    %29 = arith.addf %27, %28 : vector<1x8x1xf32>
    %30 = math.rsqrt %29 : vector<1x8x1xf32>
    %c8_i32 = arith.constant 8 : i32
    %31 = arith.muli %arg0, %c8_i32 : i32
    %32 = tpu.assume_multiple %31, 8 : i32
    %33 = arith.index_cast %32 : i32 to index
    %c0_10 = arith.constant 0 : index
    %34 = vector.load %arg2[%33, %c0_10] : memref<16x1xf32, #tpu.memory_space<vmem>>, vector<8x1xf32>
    %35 = vector.shape_cast %34 : vector<8x1xf32> to vector<1x8x1xf32>
    %36 = arith.index_cast %32 : i32 to index
    %c0_11 = arith.constant 0 : index
    %37 = vector.load %arg3[%36, %c0_11] : memref<16x1xf32, #tpu.memory_space<vmem>>, vector<8x1xf32>
    %38 = vector.shape_cast %37 : vector<8x1xf32> to vector<1x8x1xf32>
    %39 = arith.mulf %35, %30 : vector<1x8x1xf32>
    %40 = arith.mulf %13, %39 : vector<1x8x1xf32>
    %41 = arith.subf %38, %40 : vector<1x8x1xf32>
    %42 = vector.broadcast %41 : vector<1x8x1xf32> to vector<2x8x128xf32>
    %43 = arith.mulf %42, %9 : vector<2x8x128xf32>
    %44 = vector.broadcast %39 : vector<1x8x1xf32> to vector<2x8x128xf32>
    %45 = arith.addf %44, %43 : vector<2x8x128xf32>
    %c0_12 = arith.constant 0 : index
    %c0_13 = arith.constant 0 : index
    %c0_14 = arith.constant 0 : index
    %46 = vector.load %arg1[%c0_12, %c0_13, %c0_14] : memref<2x8x384xf32, #tpu.memory_space<vmem>>, vector<2x8x128xf32>
    %47 = arith.mulf %46, %45 : vector<2x8x128xf32>
    %c0_15 = arith.constant 0 : index
    %c0_16 = arith.constant 0 : index
    %c0_17 = arith.constant 0 : index
    %48 = vector.load %arg4[%c0_15, %c0_16, %c0_17] : memref<2x8x384xf32, #tpu.memory_space<vmem>>, vector<2x8x128xf32>
    tpu.vector_store %arg4[%c0_15, %c0_16, %c0_17], %47 {strides = array<i32>} : memref<2x8x384xf32, #tpu.memory_space<vmem>>, vector<2x8x128xf32>,
    %c0_18 = arith.constant 0 : index
    %c0_19 = arith.constant 0 : index
    %c128_20 = arith.constant 128 : index
    %49 = vector.load %arg1[%c0_18, %c0_19, %c128_20] : memref<2x8x384xf32, #tpu.memory_space<vmem>>, vector<2x8x128xf32>
    %50 = arith.mulf %49, %45 : vector<2x8x128xf32>
    %c0_21 = arith.constant 0 : index
    %c0_22 = arith.constant 0 : index
    %c128_23 = arith.constant 128 : index
    %51 = vector.load %arg4[%c0_21, %c0_22, %c128_23] : memref<2x8x384xf32, #tpu.memory_space<vmem>>, vector<2x8x128xf32>
    tpu.vector_store %arg4[%c0_21, %c0_22, %c128_23], %50 {strides = array<i32>} : memref<2x8x384xf32, #tpu.memory_space<vmem>>, vector<2x8x128xf32>,
    %c0_24 = arith.constant 0 : index
    %c0_25 = arith.constant 0 : index
    %c256_26 = arith.constant 256 : index
    %52 = vector.load %arg1[%c0_24, %c0_25, %c256_26] : memref<2x8x384xf32, #tpu.memory_space<vmem>>, vector<2x8x128xf32>
    %53 = arith.mulf %52, %45 : vector<2x8x128xf32>
    %c0_27 = arith.constant 0 : index
    %c0_28 = arith.constant 0 : index
    %c256_29 = arith.constant 256 : index
    %54 = vector.load %arg4[%c0_27, %c0_28, %c256_29] : memref<2x8x384xf32, #tpu.memory_space<vmem>>, vector<2x8x128xf32>
    tpu.vector_store %arg4[%c0_27, %c0_28, %c256_29], %53 {strides = array<i32>} : memref<2x8x384xf32, #tpu.memory_space<vmem>>, vector<2x8x128xf32>,
    return
  }
  func.func @transform_0(%arg0: i32) -> (i32, i32, i32) {
    %c0_i32 = arith.constant 0 : i32
    %c0_i32_0 = arith.constant 0 : i32
    %c0_i32_1 = arith.constant 0 : i32
    return %c0_i32, %arg0, %c0_i32_0 : i32, i32, i32
  }
  func.func @transform_1(%arg0: i32) -> (i32, i32) {
    %c0_i32 = arith.constant 0 : i32
    %c0_i32_0 = arith.constant 0 : i32
    %c0_i32_1 = arith.constant 0 : i32
    return %c0_i32, %c0_i32_0 : i32, i32
  }
  func.func @transform_2(%arg0: i32) -> (i32, i32) {
    %c0_i32 = arith.constant 0 : i32
    %c0_i32_0 = arith.constant 0 : i32
    %c0_i32_1 = arith.constant 0 : i32
    return %c0_i32, %c0_i32_0 : i32, i32
  }
  func.func @transform_3(%arg0: i32) -> (i32, i32, i32) {
    %c0_i32 = arith.constant 0 : i32
    %c0_i32_0 = arith.constant 0 : i32
    %c0_i32_1 = arith.constant 0 : i32
    return %c0_i32, %arg0, %c0_i32_0 : i32, i32, i32
  }
}

</mosaic_0001>

<llo_original>
// kernel: tpu_custom_call.1
$region0: #{tpu_custom_call.1}
  #allocation0 [shape = 'u32[]', space=smem, size = 0x4, offset = 0x4, fixed_abs, tag = 'smem constant byte address 0x4 - core index']
  #allocation1 [shape = 'u32[144,128]{1,0:T(1,128)}', space=vmem, size = 0x12000, scoped, tag = 'internal scratch']
  %s0 = inlined_call_operand.hbm [shape: f32[2,16,384], index: 0, kind: input, shape index: {}]
  %s1 = inlined_call_operand.vmem [shape: f32[16,1], index: 1, kind: input, shape index: {}]
  %s2 = inlined_call_operand.vmem [shape: f32[16,1], index: 2, kind: input, shape index: {}]
  %s3 = inlined_call_operand.hbm [shape: f32[2,16,384], index: 3, kind: output, shape index: {}]
  %s4 = sld [smem:[#allocation0]]
  $region49: #{tpu_custom_call.1} parent=0
    _
  %s6 = ssub.s32 1, %s4
  %s7 = scalar_select 0, %s6, %s4
  $region1: #{tpu_custom_call.1} parent=0
    #allocation2 [shape = 'u8[49152]{0}', space=vmem, size = 0xc000, scoped, tag = 'input window, operand 0']
    #allocation3 [shape = 's32[2]{0}', space=sflag, size = 0x8, scoped, tag = 'scoped memory for tpu_custom_call.1']
    #allocation4 [shape = 's32[2]{0}', space=sflag, size = 0x8, scoped, tag = 'scoped memory for tpu_custom_call.1']
    #allocation5 [shape = 'u8[49152]{0}', space=vmem, size = 0xc000, scoped, tag = 'output window, operand 0']
    %8 = vsyncpa [#allocation3], 0
    %s9 = scalar_lea.sflag [#allocation3], 1
    %10 = vsyncpa %s9, 0
    %11 = vsyncpa [#allocation4], 0
    %s12 = scalar_lea.sflag [#allocation4], 1
    %13 = vsyncpa %s12, 0
    loop: start=0, step=1, limit=4
    $region2: #{tpu_custom_call.1} parent=1 // loop_pre_header
      _
    $region3: #{tpu_custom_call.1} parent=1 // loop_header
      %s15 = sphi 0, %s19
      %p16 = scmp.ge.s32.totalorder %s15, 4
      %s25 = sphi 0, %s27
      %s28 = sphi 0, %s25
      %s29 = sphi 0, %s28
      %s45 = sphi 0, %s29
      %s49 = sphi 0, %s49
      %s51 = sphi 0, %s49
      %s52 = sphi 0, %s51
      %s66 = sphi 0, %s52
      %s70 = sphi 0, %s70
      %s72 = sphi 0, %s70
      %s73 = sphi 0, %s72
      %s87 = sphi 0, %s73
      %s93 = sphi 0, %s95
      %s96 = sphi 0, %s93
      %s97 = sphi 0, %s96
      %s113 = sphi 0, %s97
    $region4: #{tpu_custom_call.1} parent=1 // loop_header_branch
      %18 = sbr.rel (%p16) target = $region8
    $region5: #{tpu_custom_call.1} parent=1 // loop_body
      %s20 = ssub.s32 %s15, 1
      %s21 = ssub.s32 %s15, 2
      %s22 = sadd.s32 %s15, 1
      %s23 = ssub.s32 %s15, %s22
      %p24 = scmp.eq.s32.totalorder %s23, 0
      %s26 = sadd.s32 %s25, 1
      %s27 = scalar_select %p24, %s25, %s26
      %p30 = pneg %p24
      %p31 = scmp.eq.s32.totalorder %s15, 1
      %p32 = por %p30, %p31
      %p33 = scmp.ne.s32.totalorder %s25, %s28
      %p34 = scmp.eq.s32.totalorder %s15, 0
      %p35 = por %p33, %p34
      %p36 = scmp.ne.s32.totalorder %s25, %s28
      %p37 = scmp.eq.s32.totalorder %s20, 1
      %p38 = por %p36, %p37
      %p39 = scmp.ne.s32.totalorder %s28, %s29
      %p40 = scmp.eq.s32.totalorder %s20, 0
      %p41 = por %p39, %p40
      %p42 = scmp.ne.s32.totalorder %s28, %s29
      %p43 = scmp.eq.s32.totalorder %s21, 1
      %p44 = por %p42, %p43
      %p46 = scmp.ne.s32.totalorder %s29, %s45
      %p47 = scmp.eq.s32.totalorder %s21, 0
      %p48 = por %p46, %p47
      %s50 = sadd.s32 %s49, 1
      %p53 = scmp.eq.s32.totalorder %s15, 1
      %p54 = scmp.ne.s32.totalorder %s49, %s51
      %p55 = scmp.eq.s32.totalorder %s15, 0
      %p56 = por %p54, %p55
      %p57 = scmp.ne.s32.totalorder %s49, %s51
      %p58 = scmp.eq.s32.totalorder %s20, 1
      %p59 = por %p57, %p58
      %p60 = scmp.ne.s32.totalorder %s51, %s52
      %p61 = scmp.eq.s32.totalorder %s20, 0
      %p62 = por %p60, %p61
      %p63 = scmp.ne.s32.totalorder %s51, %s52
      %p64 = scmp.eq.s32.totalorder %s21, 1
      %p65 = por %p63, %p64
      %p67 = scmp.ne.s32.totalorder %s52, %s66
      %p68 = scmp.eq.s32.totalorder %s21, 0
      %p69 = por %p67, %p68
      %s71 = sadd.s32 %s70, 1
      %p74 = scmp.eq.s32.totalorder %s15, 1
      %p75 = scmp.ne.s32.totalorder %s70, %s72
      %p76 = scmp.eq.s32.totalorder %s15, 0
      %p77 = por %p75, %p76
      %p78 = scmp.ne.s32.totalorder %s70, %s72
      %p79 = scmp.eq.s32.totalorder %s20, 1
      %p80 = por %p78, %p79
      %p81 = scmp.ne.s32.totalorder %s72, %s73
      %p82 = scmp.eq.s32.totalorder %s20, 0
      %p83 = por %p81, %p82
      %p84 = scmp.ne.s32.totalorder %s72, %s73
      %p85 = scmp.eq.s32.totalorder %s21, 1
      %p86 = por %p84, %p85
      %p88 = scmp.ne.s32.totalorder %s73, %s87
      %p89 = scmp.eq.s32.totalorder %s21, 0
      %p90 = por %p88, %p89
      %s91 = ssub.s32 %s15, %s22
      %p92 = scmp.eq.s32.totalorder %s91, 0
      %s94 = sadd.s32 %s93, 1
      %s95 = scalar_select %p92, %s93, %s94
      %p98 = pneg %p92
      %p99 = scmp.eq.s32.totalorder %s15, 1
      %p100 = por %p98, %p99
      %p101 = scmp.ne.s32.totalorder %s93, %s96
      %p102 = scmp.eq.s32.totalorder %s15, 0
      %p103 = por %p101, %p102
      %p104 = scmp.ne.s32.totalorder %s93, %s96
      %p105 = scmp.eq.s32.totalorder %s20, 1
      %p106 = por %p104, %p105
      %p107 = scmp.ne.s32.totalorder %s96, %s97
      %p108 = scmp.eq.s32.totalorder %s20, 0
      %p109 = por %p107, %p108
      %p110 = scmp.ne.s32.totalorder %s96, %s97
      %p111 = scmp.eq.s32.totalorder %s21, 1
      %p112 = por %p110, %p111
      %p114 = scmp.ne.s32.totalorder %s97, %s113
      %p115 = scmp.eq.s32.totalorder %s21, 0
      %p116 = por %p114, %p115
      %p117 = scmp.le.s32.totalorder 1, %s15
      %p118 = scmp.lt.s32.totalorder %s15, 3
      %p119 = pnand %p117, %p118
      %p120 = pneg %p119
      // Predicated region
      $region9: #{tpu_custom_call.1} parent=5 // pred_check
        _
      $region10: #{tpu_custom_call.1} parent=5 // pred_check_branch
        %122 = sbr.rel (%p119) target = $region12
      $region11: #{tpu_custom_call.1} parent=5 // pred_region
        %s123 = ssub.s32 %s15, 1
        // Predicated region
        $region13: #{tpu_custom_call.1} parent=11 // pred_check
          %p124 = pneg %p62
        $region14: #{tpu_custom_call.1} parent=11 // pred_check_branch
          %126 = sbr.rel (%p124) target = $region16
        $region15: #{tpu_custom_call.1} parent=11 // pred_region
          _
        $region16: #{tpu_custom_call.1} parent=11 // pred_fallthru
          _
        // Predicated region
        $region17: #{tpu_custom_call.1} parent=11 // pred_check
          %p127 = pneg %p83
        $region18: #{tpu_custom_call.1} parent=11 // pred_check_branch
          %129 = sbr.rel (%p127) target = $region20
        $region19: #{tpu_custom_call.1} parent=11 // pred_region
          _
        $region20: #{tpu_custom_call.1} parent=11 // pred_fallthru
          _
      $region12: #{tpu_custom_call.1} parent=5 // pred_fallthru
        _
      %p130 = scmp.lt.s32.totalorder %s15, 2
      // Predicated region
      $region21: #{tpu_custom_call.1} parent=5 // pred_check
        %p131 = pneg %p130
      $region22: #{tpu_custom_call.1} parent=5 // pred_check_branch
        %133 = sbr.rel (%p131) target = $region24
      $region23: #{tpu_custom_call.1} parent=5 // pred_region
        // Predicated region
        $region25: #{tpu_custom_call.1} parent=23 // pred_check
          %p134 = pneg %p35
        $region26: #{tpu_custom_call.1} parent=23 // pred_check_branch
          %136 = sbr.rel (%p134) target = $region28
        $region27: #{tpu_custom_call.1} parent=23 // pred_region
          %s137 = sand.u32 %s25, 1
          %s138 = scalar_lea.sflag [#allocation3], %s137
          %s139 = sand.u32 %s25, 1
          %s140 = smul.addr %s139, 48
          %s141 = scalar_lea.vmem [#allocation2], %s140
          %s143 = ssub.s32 768, 768
          %144 = vsyncadd %s138, %s143
          %s145 = smul.addr %s15, 3
          %s146 = smul.addr %s145, 128
          %s147 = scalar_lea.hbm %s0, %s146
          %s148 = sshll.u32 %s141, 4
          %s149 = int_to_ptr.vmem [resolvable:$true] %s148
          %154 = dma.hbm_to_vmem [thread:$0]  %s147, 768, %s149, %s138, 768, 384, 24
        $region28: #{tpu_custom_call.1} parent=23 // pred_fallthru
          _
      $region24: #{tpu_custom_call.1} parent=5 // pred_fallthru
        _
      %p155 = scmp.le.s32.totalorder 1, %s15
      %p156 = scmp.lt.s32.totalorder %s15, 3
      %p157 = pnand %p155, %p156
      %p158 = pneg %p157
      // Predicated region
      $region29: #{tpu_custom_call.1} parent=5 // pred_check
        _
      $region30: #{tpu_custom_call.1} parent=5 // pred_check_branch
        %160 = sbr.rel (%p157) target = $region32
      $region31: #{tpu_custom_call.1} parent=5 // pred_region
        %s161 = ssub.s32 %s15, 1
        %s162 = sand.u32 %s28, 1
        %s163 = scalar_lea.sflag [#allocation3], %s162
        %s164 = sand.u32 %s28, 1
        %s165 = smul.addr %s164, 48
        %s166 = scalar_lea.vmem [#allocation2], %s165
        // Predicated region
        $region33: #{tpu_custom_call.1} parent=31 // pred_check
          %p167 = pneg %p41
        $region34: #{tpu_custom_call.1} parent=31 // pred_check_branch
          %169 = sbr.rel (%p167) target = $region36
        $region35: #{tpu_custom_call.1} parent=31 // pred_region
          %170 = dma.done %s163, 768
        $region36: #{tpu_custom_call.1} parent=31 // pred_fallthru
          _
        %s171 = sand.u32 %s28, 1
        %s172 = scalar_lea.sflag [#allocation3], %s171
        %s173 = sand.u32 %s28, 1
        %s174 = smul.addr %s173, 48
        %s175 = scalar_lea.vmem [#allocation2], %s174
        %p176 = pneg %p41
        %p177 = pneg %p38
        %p178 = pneg %p62
        %p179 = pneg %p59
        %p180 = pneg %p83
        %p181 = pneg %p80
        %p182 = pneg %p109
        %p183 = pneg %p106
        %s184 = sand.u32 %s96, 1
        %s185 = scalar_lea.sflag [#allocation4], %s184
        %s186 = sand.u32 %s96, 1
        %s187 = smul.addr %s186, 48
        %s188 = scalar_lea.vmem [#allocation5], %s187
        %v189 = vld [vmem:[%s166] sm:$0xff]
        %v190 = vld [vmem:[%s166 + $0x18] sm:$0xff]
        %v191 = vmul.f32 %v189, %v189
        %v192 = vmul.f32 %v190, %v190
        %v193 = vld [vmem:[%s166 + $0x8] sm:$0xff]
        %v194 = vld [vmem:[%s166 + $0x20] sm:$0xff]
        %v195 = vmul.f32 %v193, %v193
        %v196 = vmul.f32 %v194, %v194
        %v197 = vadd.f32 %v191, %v195
        %v198 = vadd.f32 %v192, %v196
        %v199 = vld [vmem:[%s166 + $0x10] sm:$0xff]
        %v200 = vld [vmem:[%s166 + $0x28] sm:$0xff]
        %v201 = vmul.f32 %v199, %v199
        %v202 = vmul.f32 %v200, %v200
        %v203 = vadd.f32 %v197, %v201
        %v204 = vadd.f32 %v198, %v202
        %v205 = vrsqrt.pop %v203
        %v206 = vmul.f32 %v203, %v205
        %vm207 = vcmp.eq.f32.partialorder %v203, inf
        %v208 = vsel %vm207, %v203, %v206
        %vm209 = vcmp.eq.f32.partialorder %v203, 0.0
        %v210 = vand.u32 %v203, 2147483648
        %v211 = vsel %vm209, %v210, %v208
        %v212 = vrsqrt.pop %v204
        %v213 = vmul.f32 %v204, %v212
        %vm214 = vcmp.eq.f32.partialorder %v204, inf
        %v215 = vsel %vm214, %v204, %v213
        %vm216 = vcmp.eq.f32.partialorder %v204, 0.0
        %v217 = vand.u32 %v204, 2147483648
        %v218 = vsel %vm216, %v217, %v215
        %v219 = vrsqrt.pop %v203
        %v220 = vrsqrt.pop %v204
        %v221 = vadd.f32 %v211, %v218
        %222 = vadd.xlane.f32.xlu0 %v221
        %v223 = vpop.xlane.xlu0 %222
        %v224 = vmul.f32 %v223, 0.03125
        %v225 = vsub.f32 %v211, %v224
        %v226 = vsub.f32 %v218, %v224
        %v227 = vlaneseq
        %v228 = vand.u32 %v227, 127
        %vm229 = vcmp.lt.s32.totalorder %v228, 16
        %v230 = vsel %vm229, 1, 0
        %v231 = vcvt.s32.f32 %v230
        %v232 = vmul.f32 %v225, %v231
        %v233 = vmul.f32 %v226, %v231
        %v234 = vmul.f32 %v232, %v232
        %v235 = vmul.f32 %v233, %v233
        %v236 = vadd.f32 %v234, %v235
        %237 = vadd.xlane.f32.xlu0 %v236
        %v238 = vpop.xlane.xlu0 %237
        %v239 = vmul.f32 %v238, 0.03125
        %v240 = vadd.f32 %v239, 1e-05
        %v241 = vrsqrt.pop %v240
        %s242 = smul.u32 %s20, 8
        %s243 = scalar_lea.vmem %s1, %s242
        %v244 = vld [vmem:[%s243] sm:$0xff]
        %s245 = scalar_lea.vmem %s2, %s242
        %v246 = vld [vmem:[%s245] sm:$0xff]
        %v247 = vmul.f32 %v244, %v241
        %v248 = vmul.f32 %v224, %v247
        %v249 = vsub.f32 %v246, %v248
        %251 = vset.pattern.permute.xlu0 0
        %252 = vperm.xlu0 %251, %v249
        %v253 = vpop.permute.xlu0 %252
        %v255 = vmul.f32 %v253, %v219
        %v256 = vmul.f32 %v253, %v220
        %258 = vset.pattern.permute.xlu0 0
        %259 = vperm.xlu0 %258, %v247
        %v260 = vpop.permute.xlu0 %259
        %v262 = vadd.f32 %v260, %v255
        %v263 = vadd.f32 %v260, %v256
        %v264 = vmul.f32 %v189, %v262
        %v265 = vmul.f32 %v190, %v263
        %266 = vst [vmem:[%s188] sm:$0xff] %v264
        %267 = vst [vmem:[%s188 + $0x18] sm:$0xff] %v265
        %v268 = vld [vmem:[%s166 + $0x8] sm:$0xff]
        %v269 = vld [vmem:[%s166 + $0x20] sm:$0xff]
        %v270 = vmul.f32 %v268, %v262
        %v271 = vmul.f32 %v269, %v263
        %272 = vst [vmem:[%s188 + $0x8] sm:$0xff] %v270
        %273 = vst [vmem:[%s188 + $0x20] sm:$0xff] %v271
        %v274 = vld [vmem:[%s166 + $0x10] sm:$0xff]
        %v275 = vld [vmem:[%s166 + $0x28] sm:$0xff]
        %v276 = vmul.f32 %v274, %v262
        %v277 = vmul.f32 %v275, %v263
        %278 = vst [vmem:[%s188 + $0x10] sm:$0xff] %v276
        %279 = vst [vmem:[%s188 + $0x28] sm:$0xff] %v277
        %s280 = sand.u32 %s96, 1
        %s281 = scalar_lea.sflag [#allocation4], %s280
        %s282 = sand.u32 %s96, 1
        %s283 = smul.addr %s282, 48
        %s284 = scalar_lea.vmem [#allocation5], %s283
        // Predicated region
        $region37: #{tpu_custom_call.1} parent=31 // pred_check
          %p285 = pneg %p106
        $region38: #{tpu_custom_call.1} parent=31 // pred_check_branch
          %287 = sbr.rel (%p285) target = $region40
        $region39: #{tpu_custom_call.1} parent=31 // pred_region
          %s289 = ssub.s32 768, 768
          %290 = vsyncadd %s281, %s289
          %s291 = smul.addr %s20, 3
          %s292 = smul.addr %s291, 128
          %s293 = scalar_lea.hbm %s3, %s292
          %s294 = sshll.u32 %s284, 4
          %s295 = int_to_ptr.vmem [resolvable:$true] %s294
          %300 = dma.vmem_to_hbm [thread:$0]  %s295, 768, %s293, %s281, 384, 768, 24
        $region40: #{tpu_custom_call.1} parent=31 // pred_fallthru
          _
      $region32: #{tpu_custom_call.1} parent=5 // pred_fallthru
        _
      %p301 = scmp.le.s32.totalorder 2, %s15
      // Predicated region
      $region41: #{tpu_custom_call.1} parent=5 // pred_check
        %p302 = pneg %p301
      $region42: #{tpu_custom_call.1} parent=5 // pred_check_branch
        %304 = sbr.rel (%p302) target = $region44
      $region43: #{tpu_custom_call.1} parent=5 // pred_region
        %s305 = ssub.s32 %s15, 2
        // Predicated region
        $region45: #{tpu_custom_call.1} parent=43 // pred_check
          %p306 = pneg %p112
        $region46: #{tpu_custom_call.1} parent=43 // pred_check_branch
          %308 = sbr.rel (%p306) target = $region48
        $region47: #{tpu_custom_call.1} parent=43 // pred_region
          %s309 = sand.u32 %s97, 1
          %s310 = scalar_lea.sflag [#allocation4], %s309
          %s311 = sand.u32 %s97, 1
          %s312 = smul.addr %s311, 48
          %s313 = scalar_lea.vmem [#allocation5], %s312
          %314 = dma.done %s310, 768
        $region48: #{tpu_custom_call.1} parent=43 // pred_fallthru
          _
      $region44: #{tpu_custom_call.1} parent=5 // pred_fallthru
        _
    $region6: #{tpu_custom_call.1} parent=1 // loop_footer
      %s19 = sadd.s32 1, %s15
    $region7: #{tpu_custom_call.1} parent=1 // loop_footer_branch
      %14 = sbr.rel target = $region3
    $region8: #{tpu_custom_call.1} parent=1 // loop_exit
      _
    %315 = vsyncpa [#allocation3], 1
    %s316 = scalar_lea.sflag [#allocation3], 1
    %317 = vsyncpa %s316, 1
    %318 = vsyncpa [#allocation4], 1
    %s319 = scalar_lea.sflag [#allocation4], 1
    %320 = vsyncpa %s319, 1

</llo_original>
